<compile_context>
chip_gen: v5e
topology: v5e:2x2
jax: 0.10.0
libtpu: 0.0.40
codegen_flags: <defaults>
</compile_context>

<pallas_src>
import math

import jax
import jax.numpy as jnp
from jax.experimental import pallas as pl
from jax.experimental.pallas import tpu as pltpu


def _silu(x):
    return x * jax.nn.sigmoid(x)


# ---------------------------------------------------------------------------
# Path A: small-input fast path — single pallas_call, fully VMEM-resident
# (5 HBM passes instead of 9). Only dispatched when it comfortably fits the
# default scoped-VMEM budget of every TPU generation.
# ---------------------------------------------------------------------------
def _fused_kernel(x1_ref, x2_ref, x3_ref, x4_ref, w1_ref, w2_ref, out_ref):
    # Cast each input to f32 exactly once; reuse for pooling AND weighted sum.
    x1 = x1_ref[...].astype(jnp.float32)
    x2 = x2_ref[...].astype(jnp.float32)
    x3 = x3_ref[...].astype(jnp.float32)
    x4 = x4_ref[...].astype(jnp.float32)

    # AdaptiveAvgPool2d(1): mean over the flattened spatial (last) axis.
    # Channel order matches torch.cat((x1,x2,x3,x4), dim=1).
    pooled = jnp.concatenate(
        [jnp.mean(x1, axis=-1), jnp.mean(x2, axis=-1),
         jnp.mean(x3, axis=-1), jnp.mean(x4, axis=-1)], axis=-1)   # (B, 4C)

    # fc: Linear(4C->4C//r, no bias) -> SiLU -> Linear(->4, no bias) -> SiLU
    h = _silu(jnp.dot(pooled, w1_ref[...], preferred_element_type=jnp.float32))
    a = _silu(jnp.dot(h, w2_ref[...], preferred_element_type=jnp.float32))  # (B,4)

    out = (a[:, 0][:, None, None] * x1 + a[:, 1][:, None, None] * x2
           + a[:, 2][:, None, None] * x3 + a[:, 3][:, None, None] * x4)
    out_ref[...] = out.astype(out_ref.dtype)


def _fused_path(x1, x2, x3, x4, w1, w2):
    B, C, H, W = x1.shape
    HW = H * W
    xs = [x.reshape(B, C, HW) for x in (x1, x2, x3, x4)]

    feat_spec = pl.BlockSpec((B, C, HW), lambda i: (0, 0, 0))
    out = pl.pallas_call(
        _fused_kernel,
        out_shape=jax.ShapeDtypeStruct((B, C, HW), x1.dtype),
        grid_spec=pl.GridSpec(
            grid=(1,),
            in_specs=[feat_spec, feat_spec, feat_spec, feat_spec,
                      pl.BlockSpec(w1.shape, lambda i: (0, 0)),
                      pl.BlockSpec(w2.shape, lambda i: (0, 0))],
            out_specs=feat_spec),
        compiler_params=pltpu.CompilerParams(
            dimension_semantics=("arbitrary",)),
    )(*xs, w1, w2)
    return out.reshape(B, C, H, W)


# ---------------------------------------------------------------------------
# Path B: streaming two-pass path.
#   pass 1 (plain JAX/XLA): global-avg-pool + tiny MLP -> gates a (B, 4)
#   pass 2 (Pallas):        tiled, double-buffered, lane-dense weighted sum
# ---------------------------------------------------------------------------
def _compute_gates(x1, x2, x3, x4, w1, w2):
    # Hoisted out of the Pallas kernel: the MLP is ~B*(16*4 + 4*4) FLOPs and
    # the global reduction would otherwise force whole-array residency inside
    # the kernel.
    pooled = jnp.concatenate(
        [jnp.mean(x, axis=(2, 3), dtype=jnp.float32)
         for x in (x1, x2, x3, x4)], axis=-1)                       # (B, 4C)
    h = _silu(jnp.dot(pooled, w1.astype(jnp.float32)))
    return _silu(jnp.dot(h, w2.astype(jnp.float32)))                # (B, 4) f32


def _weighted_sum_kernel(a_ref, x1_ref, x2_ref, x3_ref, x4_ref, o_ref):
    a = a_ref[...]                                  # (block_rows, 4) f32
    acc = a[:, 0:1] * x1_ref[...]
    acc = acc + a[:, 1:2] * x2_ref[...]
    acc = acc + a[:, 2:3] * x3_ref[...]
    acc = acc + a[:, 3:4] * x4_ref[...]
    o_ref[...] = acc.astype(o_ref.dtype)


def _pick_block(extent, target):
    # `target` is a multiple of the hardware tile (8 sublanes / 128 lanes), so
    # it is always a legal block size; a ragged last block is fine for this
    # purely elementwise op (out-of-bounds writes are masked).
    return extent if extent <= target else target


def _two_pass_path(x1, x2, x3, x4, w1, w2):
    B, C, H, W = x1.shape
    HW = H * W
    a = _compute_gates(x1, x2, x3, x4, w1, w2)      # (B, 4)

    # Lane-dense 2-D layout: prefer (B*C, H*W) (full sublane utilisation); if
    # H*W is not a multiple of 128, fold C into the lane axis instead. The gate
    # broadcasts over C, so expanding it row-wise is semantically free.
    if HW % 128 == 0:
        rows, cols = B * C, HW
        a_rows = jnp.repeat(a, C, axis=0)           # (B*C, 4)
    else:
        rows, cols = B, C * HW
        a_rows = a                                  # (B, 4)
    xs = [x.reshape(rows, cols) for x in (x1, x2, x3, x4)]

    br = _pick_block(rows, 256)
    bc = _pick_block(cols, 1024)
    grid = (pl.cdiv(rows, br), pl.cdiv(cols, bc))
    # VMEM footprint: (4 inputs + 1 output) * 2 buffers * (256*1024*4B) ≈ 10 MiB
    # plus the tiny gate blocks — well inside the raised 32 MiB scoped limit,
    # which is safe on every generation (v5e/v6e: 128 MiB physical, v7x: 64 MiB).

    x_spec = pl.BlockSpec((br, bc), lambda i, j: (i, j))
    a_spec = pl.BlockSpec((br, 4), lambda i, j: (i, 0))

    out = pl.pallas_call(
        _weighted_sum_kernel,
        out_shape=jax.ShapeDtypeStruct((rows, cols), x1.dtype),
        grid_spec=pl.GridSpec(
            grid=grid,
            in_specs=[a_spec, x_spec, x_spec, x_spec, x_spec],
            out_specs=x_spec),
        compiler_params=pltpu.CompilerParams(
            dimension_semantics=("parallel", "parallel"),
            vmem_limit_bytes=32 * 1024 * 1024),
    )(a_rows, *xs)
    return out.reshape(B, C, H, W)


def cross_feature_fusion(x1, x2, x3, x4, w1, w2, *, force_two_pass=False,
                         fused_vmem_budget_bytes=8 * 1024 * 1024):
    """x1..x4: (B, C, H, W). w1: (4C, hidden). w2: (hidden, 4)."""
    B, C, H, W = x1.shape
    # Conservative single-pass footprint: 4 inputs + 1 output as f32, with a 2x
    # slack factor for in-kernel temporaries / buffering.
    fused_bytes = 5 * B * C * H * W * 4 * 2
    if not force_two_pass and fused_bytes <= fused_vmem_budget_bytes:
        return _fused_path(x1, x2, x3, x4, w1, w2)
    return _two_pass_path(x1, x2, x3, x4, w1, w2)


def _reference(x1, x2, x3, x4, w1, w2):
    # Pure-JAX reference for correctness checks.
    pooled = jnp.concatenate(
        [jnp.mean(x, axis=(2, 3)) for x in (x1, x2, x3, x4)], axis=-1)
    a = _silu(_silu(pooled @ w1) @ w2)              # (B, 4)
    a = a[:, :, None, None, None]
    return a[:, 0] * x1 + a[:, 1] * x2 + a[:, 2] * x3 + a[:, 3] * x4


if __name__ == "__main__":
    B, max_channel, H, W = 2, 4, 16, 16
    fc_reduction = 4
    in_features = max_channel * 4                   # 16
    hidden = in_features // fc_reduction            # 4

    key = jax.random.PRNGKey(0)
    k1, k2, k3, k4, kw1, kw2 = jax.random.split(key, 6)
    x1 = jax.random.normal(k1, (B, max_channel, H, W), jnp.float32)
    x2 = jax.random.normal(k2, (B, max_channel, H, W), jnp.float32)
    x3 = jax.random.normal(k3, (B, max_channel, H, W), jnp.float32)
    x4 = jax.random.normal(k4, (B, max_channel, H, W), jnp.float32)

    # nn.Linear-style weights stored as (in, out) so the kernels do x @ W.
    bound1 = 1.0 / math.sqrt(in_features)
    bound2 = 1.0 / math.sqrt(hidden)
    w1 = jax.random.uniform(kw1, (in_features, hidden), jnp.float32,
                            minval=-bound1, maxval=bound1)
    w2 = jax.random.uniform(kw2, (hidden, 4), jnp.float32,
                            minval=-bound2, maxval=bound2)

    ref = _reference(x1, x2, x3, x4, w1, w2)

    # 1) Default dispatch: single-pass VMEM-resident fast path at this size.
    out_fast = jax.block_until_ready(cross_feature_fusion(x1, x2, x3, x4, w1, w2))
    assert out_fast.shape == (B, max_channel, H, W)
    assert jnp.allclose(out_fast, ref, atol=1e-5, rtol=1e-5), "fused path mismatch"

    # 2) Force the streaming tiled path (the large-shape code path).
    out_tiled = jax.block_until_ready(
        cross_feature_fusion(x1, x2, x3, x4, w1, w2, force_two_pass=True))
    assert jnp.allclose(out_tiled, ref, atol=1e-5, rtol=1e-5), "tiled path mismatch"

    # 3) Slightly larger spatial extent so the tiled path runs a multi-step grid
    #    (cols = 4096 -> 4 lane-tiles of 1024).
    H2 = W2 = 64
    y1 = jax.random.normal(k1, (B, max_channel, H2, W2), jnp.float32)
    y2 = jax.random.normal(k2, (B, max_channel, H2, W2), jnp.float32)
    y3 = jax.random.normal(k3, (B, max_channel, H2, W2), jnp.float32)
    y4 = jax.random.normal(k4, (B, max_channel, H2, W2), jnp.float32)
    ref2 = _reference(y1, y2, y3, y4, w1, w2)
    out2 = jax.block_until_ready(
        cross_feature_fusion(y1, y2, y3, y4, w1, w2, force_two_pass=True))
    assert jnp.allclose(out2, ref2, atol=1e-5, rtol=1e-5), "multi-tile mismatch"

    print("KERNEL_OK")
</pallas_src>

<mosaic_0001>
module attributes {stable_mosaic.version = 11 : i64} {
  func.func @_fused_kernel(%arg0: i32, %arg1: memref<2x4x256xf32, #tpu.memory_space<vmem>>, %arg2: memref<2x4x256xf32, #tpu.memory_space<vmem>>, %arg3: memref<2x4x256xf32, #tpu.memory_space<vmem>>, %arg4: memref<2x4x256xf32, #tpu.memory_space<vmem>>, %arg5: memref<16x4xf32, #tpu.memory_space<vmem>>, %arg6: memref<4x4xf32, #tpu.memory_space<vmem>>, %arg7: memref<2x4x256xf32, #tpu.memory_space<vmem>>) attributes {dimension_semantics = [#tpu.dimension_semantics<arbitrary>], iteration_bounds = array<i64: 1>, scalar_prefetch = 0 : i64, scratch_operands = 0 : i64, tpu.core_type = #tpu.core_type<tc>, window_params = [{pipeline_mode = #tpu.pipeline_mode<synchronous>, transform_indices = @transform_0, window_bounds = array<i64: 2, 4, 256>}, {pipeline_mode = #tpu.pipeline_mode<synchronous>, transform_indices = @transform_1, window_bounds = array<i64: 2, 4, 256>}, {pipeline_mode = #tpu.pipeline_mode<synchronous>, transform_indices = @transform_2, window_bounds = array<i64: 2, 4, 256>}, {pipeline_mode = #tpu.pipeline_mode<synchronous>, transform_indices = @transform_3, window_bounds = array<i64: 2, 4, 256>}, {pipeline_mode = #tpu.pipeline_mode<synchronous>, transform_indices = @transform_4, window_bounds = array<i64: 16, 4>}, {pipeline_mode = #tpu.pipeline_mode<synchronous>, transform_indices = @transform_5, window_bounds = array<i64: 4, 4>}, {pipeline_mode = #tpu.pipeline_mode<synchronous>, transform_indices = @transform_6, window_bounds = array<i64: 2, 4, 256>}]} {
    %c0 = arith.constant 0 : index
    %c0_0 = arith.constant 0 : index
    %c0_1 = arith.constant 0 : index
    %0 = vector.load %arg1[%c0, %c0_0, %c0_1] : memref<2x4x256xf32, #tpu.memory_space<vmem>>, vector<2x4x256xf32>
    %c0_2 = arith.constant 0 : index
    %c0_3 = arith.constant 0 : index
    %c0_4 = arith.constant 0 : index
    %1 = vector.load %arg2[%c0_2, %c0_3, %c0_4] : memref<2x4x256xf32, #tpu.memory_space<vmem>>, vector<2x4x256xf32>
    %c0_5 = arith.constant 0 : index
    %c0_6 = arith.constant 0 : index
    %c0_7 = arith.constant 0 : index
    %2 = vector.load %arg3[%c0_5, %c0_6, %c0_7] : memref<2x4x256xf32, #tpu.memory_space<vmem>>, vector<2x4x256xf32>
    %c0_8 = arith.constant 0 : index
    %c0_9 = arith.constant 0 : index
    %c0_10 = arith.constant 0 : index
    %3 = vector.load %arg4[%c0_8, %c0_9, %c0_10] : memref<2x4x256xf32, #tpu.memory_space<vmem>>, vector<2x4x256xf32>
    %cst = arith.constant dense<0.000000e+00> : vector<2x4xf32>
    %4 = vector.multi_reduction <add>, %0, %cst [2] : vector<2x4x256xf32> to vector<2x4xf32>
    %cst_11 = arith.constant 2.560000e+02 : f32
    %5 = vector.broadcast %cst_11 : f32 to vector<2x4xf32>
    %6 = arith.divf %4, %5 : vector<2x4xf32>
    %cst_12 = arith.constant dense<0.000000e+00> : vector<2x4xf32>
    %7 = vector.multi_reduction <add>, %1, %cst_12 [2] : vector<2x4x256xf32> to vector<2x4xf32>
    %cst_13 = arith.constant 2.560000e+02 : f32
    %8 = vector.broadcast %cst_13 : f32 to vector<2x4xf32>
    %9 = arith.divf %7, %8 : vector<2x4xf32>
    %cst_14 = arith.constant dense<0.000000e+00> : vector<2x4xf32>
    %10 = vector.multi_reduction <add>, %2, %cst_14 [2] : vector<2x4x256xf32> to vector<2x4xf32>
    %cst_15 = arith.constant 2.560000e+02 : f32
    %11 = vector.broadcast %cst_15 : f32 to vector<2x4xf32>
    %12 = arith.divf %10, %11 : vector<2x4xf32>
    %cst_16 = arith.constant dense<0.000000e+00> : vector<2x4xf32>
    %13 = vector.multi_reduction <add>, %3, %cst_16 [2] : vector<2x4x256xf32> to vector<2x4xf32>
    %cst_17 = arith.constant 2.560000e+02 : f32
    %14 = vector.broadcast %cst_17 : f32 to vector<2x4xf32>
    %15 = arith.divf %13, %14 : vector<2x4xf32>
    %16 = tpu.concatenate %6, %9, %12, %15 in 1 : vector<2x4xf32>, vector<2x4xf32>, vector<2x4xf32>, vector<2x4xf32> -> vector<2x16xf32>
    %c0_18 = arith.constant 0 : index
    %c0_19 = arith.constant 0 : index
    %17 = vector.load %arg5[%c0_18, %c0_19] : memref<16x4xf32, #tpu.memory_space<vmem>>, vector<16x4xf32>
    %cst_20 = arith.constant dense<0.000000e+00> : vector<2x4xf32>
    %18 = tpu.matmul %16, %17, %cst_20 {dimension_numbers = #tpu.dot_dimension_numbers<[1], [0], [0], [1], [0, 0, 1, 1], [], []>} : vector<2x16xf32>, vector<16x4xf32>, vector<2x4xf32> -> vector<2x4xf32>
    %19 = arith.negf %18 : vector<2x4xf32>
    %20 = math.exp %19 : vector<2x4xf32>
    %cst_21 = arith.constant 1.000000e+00 : f32
    %21 = vector.broadcast %cst_21 : f32 to vector<2x4xf32>
    %22 = arith.addf %21, %20 : vector<2x4xf32>
    %23 = arith.divf %21, %22 : vector<2x4xf32>
    %24 = arith.mulf %18, %23 : vector<2x4xf32>
    %c0_22 = arith.constant 0 : index
    %c0_23 = arith.constant 0 : index
    %25 = vector.load %arg6[%c0_22, %c0_23] : memref<4x4xf32, #tpu.memory_space<vmem>>, vector<4x4xf32>
    %cst_24 = arith.constant dense<0.000000e+00> : vector<2x4xf32>
    %26 = tpu.matmul %24, %25, %cst_24 {dimension_numbers = #tpu.dot_dimension_numbers<[1], [0], [0], [1], [0, 0, 1, 1], [], []>} : vector<2x4xf32>, vector<4x4xf32>, vector<2x4xf32> -> vector<2x4xf32>
    %27 = arith.negf %26 : vector<2x4xf32>
    %28 = math.exp %27 : vector<2x4xf32>
    %cst_25 = arith.constant 1.000000e+00 : f32
    %29 = vector.broadcast %cst_25 : f32 to vector<2x4xf32>
    %30 = arith.addf %29, %28 : vector<2x4xf32>
    %31 = arith.divf %29, %30 : vector<2x4xf32>
    %32 = arith.mulf %26, %31 : vector<2x4xf32>
    %33 = vector.extract_strided_slice %32 {offsets = [0, 0], sizes = [2, 1], strides = [1, 1]} : vector<2x4xf32> to vector<2x1xf32>
    %34 = vector.shape_cast %33 : vector<2x1xf32> to vector<2xf32>
    %35 = vector.shape_cast %34 : vector<2xf32> to vector<2x1x1xf32>
    %36 = vector.broadcast %35 : vector<2x1x1xf32> to vector<2x4x256xf32>
    %37 = arith.mulf %36, %0 : vector<2x4x256xf32>
    %38 = vector.extract_strided_slice %32 {offsets = [0, 1], sizes = [2, 1], strides = [1, 1]} : vector<2x4xf32> to vector<2x1xf32>
    %39 = vector.shape_cast %38 : vector<2x1xf32> to vector<2xf32>
    %40 = vector.shape_cast %39 : vector<2xf32> to vector<2x1x1xf32>
    %41 = vector.broadcast %40 : vector<2x1x1xf32> to vector<2x4x256xf32>
    %42 = arith.mulf %41, %1 : vector<2x4x256xf32>
    %43 = arith.addf %37, %42 : vector<2x4x256xf32>
    %44 = vector.extract_strided_slice %32 {offsets = [0, 2], sizes = [2, 1], strides = [1, 1]} : vector<2x4xf32> to vector<2x1xf32>
    %45 = vector.shape_cast %44 : vector<2x1xf32> to vector<2xf32>
    %46 = vector.shape_cast %45 : vector<2xf32> to vector<2x1x1xf32>
    %47 = vector.broadcast %46 : vector<2x1x1xf32> to vector<2x4x256xf32>
    %48 = arith.mulf %47, %2 : vector<2x4x256xf32>
    %49 = arith.addf %43, %48 : vector<2x4x256xf32>
    %50 = vector.extract_strided_slice %32 {offsets = [0, 3], sizes = [2, 1], strides = [1, 1]} : vector<2x4xf32> to vector<2x1xf32>
    %51 = vector.shape_cast %50 : vector<2x1xf32> to vector<2xf32>
    %52 = vector.shape_cast %51 : vector<2xf32> to vector<2x1x1xf32>
    %53 = vector.broadcast %52 : vector<2x1x1xf32> to vector<2x4x256xf32>
    %54 = arith.mulf %53, %3 : vector<2x4x256xf32>
    %55 = arith.addf %49, %54 : vector<2x4x256xf32>
    %c0_26 = arith.constant 0 : index
    %c0_27 = arith.constant 0 : index
    %c0_28 = arith.constant 0 : index
    %56 = vector.load %arg7[%c0_26, %c0_27, %c0_28] : memref<2x4x256xf32, #tpu.memory_space<vmem>>, vector<2x4x256xf32>
    tpu.vector_store %arg7[%c0_26, %c0_27, %c0_28], %55 {strides = array<i32>} : memref<2x4x256xf32, #tpu.memory_space<vmem>>, vector<2x4x256xf32>,
    return
  }
  func.func @transform_0(%arg0: i32) -> (i32, i32, i32) {
    %c0_i32 = arith.constant 0 : i32
    %c0_i32_0 = arith.constant 0 : i32
    %c0_i32_1 = arith.constant 0 : i32
    %c0_i32_2 = arith.constant 0 : i32
    return %c0_i32, %c0_i32_0, %c0_i32_1 : i32, i32, i32
  }
  func.func @transform_1(%arg0: i32) -> (i32, i32, i32) {
    %c0_i32 = arith.constant 0 : i32
    %c0_i32_0 = arith.constant 0 : i32
    %c0_i32_1 = arith.constant 0 : i32
    %c0_i32_2 = arith.constant 0 : i32
    return %c0_i32, %c0_i32_0, %c0_i32_1 : i32, i32, i32
  }
  func.func @transform_2(%arg0: i32) -> (i32, i32, i32) {
    %c0_i32 = arith.constant 0 : i32
    %c0_i32_0 = arith.constant 0 : i32
    %c0_i32_1 = arith.constant 0 : i32
    %c0_i32_2 = arith.constant 0 : i32
    return %c0_i32, %c0_i32_0, %c0_i32_1 : i32, i32, i32
  }
  func.func @transform_3(%arg0: i32) -> (i32, i32, i32) {
    %c0_i32 = arith.constant 0 : i32
    %c0_i32_0 = arith.constant 0 : i32
    %c0_i32_1 = arith.constant 0 : i32
    %c0_i32_2 = arith.constant 0 : i32
    return %c0_i32, %c0_i32_0, %c0_i32_1 : i32, i32, i32
  }
  func.func @transform_4(%arg0: i32) -> (i32, i32) {
    %c0_i32 = arith.constant 0 : i32
    %c0_i32_0 = arith.constant 0 : i32
    %c0_i32_1 = arith.constant 0 : i32
    return %c0_i32, %c0_i32_0 : i32, i32
  }
  func.func @transform_5(%arg0: i32) -> (i32, i32) {
    %c0_i32 = arith.constant 0 : i32
    %c0_i32_0 = arith.constant 0 : i32
    %c0_i32_1 = arith.constant 0 : i32
    return %c0_i32, %c0_i32_0 : i32, i32
  }
  func.func @transform_6(%arg0: i32) -> (i32, i32, i32) {
    %c0_i32 = arith.constant 0 : i32
    %c0_i32_0 = arith.constant 0 : i32
    %c0_i32_1 = arith.constant 0 : i32
    %c0_i32_2 = arith.constant 0 : i32
    return %c0_i32, %c0_i32_0, %c0_i32_1 : i32, i32, i32
  }
}

</mosaic_0001>

<llo_original>
// kernel: tpu_custom_call.1
$region0: #{tpu_custom_call.1}
  #allocation0 [shape = 'u32[]', space=smem, size = 0x4, offset = 0x4, fixed_abs, tag = 'smem constant byte address 0x4 - core index']
  #allocation1 [shape = 'u32[72,128]{1,0:T(1,128)}', space=vmem, size = 0x9000, scoped, tag = 'internal scratch']
  %s0 = inlined_call_operand.vmem [shape: f32[2,4,256], index: 0, kind: input, shape index: {}]
  %s1 = inlined_call_operand.hbm [shape: f32[2,4,256], index: 1, kind: input, shape index: {}]
  %s2 = inlined_call_operand.hbm [shape: f32[2,4,256], index: 2, kind: input, shape index: {}]
  %s3 = inlined_call_operand.hbm [shape: f32[2,4,256], index: 3, kind: input, shape index: {}]
  %s4 = inlined_call_operand.vmem [shape: f32[16,4], index: 4, kind: input, shape index: {}]
  %s5 = inlined_call_operand.vmem [shape: f32[4,4], index: 5, kind: input, shape index: {}]
  %s6 = inlined_call_operand.hbm [shape: f32[2,4,256], index: 6, kind: output, shape index: {}]
  %s7 = sld [smem:[#allocation0]]
  $region46: #{tpu_custom_call.1} parent=0
    _
  %s9 = ssub.s32 1, %s7
  %s10 = scalar_select 0, %s9, %s7
  $region1: #{tpu_custom_call.1} parent=0
    #allocation2 [shape = 'u8[8192]{0}', space=vmem, size = 0x2000, scoped, tag = 'input window, operand 1, single buffered']
    #allocation3 [shape = 's32[1]{0}', space=sflag, size = 0x4, scoped, tag = 'scoped memory for tpu_custom_call.1']
    #allocation4 [shape = 's32[1]{0}', space=sflag, size = 0x4, scoped, tag = 'scoped memory for tpu_custom_call.1']
    #allocation5 [shape = 'u8[8192]{0}', space=vmem, size = 0x2000, scoped, tag = 'input window, operand 2, single buffered']
    #allocation6 [shape = 's32[1]{0}', space=sflag, size = 0x4, scoped, tag = 'scoped memory for tpu_custom_call.1']
    #allocation7 [shape = 'u8[8192]{0}', space=vmem, size = 0x2000, scoped, tag = 'input window, operand 3, single buffered']
    #allocation8 [shape = 'u8[8192]{0}', space=vmem, size = 0x2000, scoped, tag = 'output window, operand 0, single buffered']
    %11 = vsyncpa [#allocation3], 0
    %12 = vsyncpa [#allocation6], 0
    %13 = vsyncpa [#allocation4], 0
    // Predicated region
    $region2: #{tpu_custom_call.1} parent=1 // pred_check
      _
    $region3: #{tpu_custom_call.1} parent=1 // pred_check_branch
      %15 = sbr.rel (0) target = $region5
    $region4: #{tpu_custom_call.1} parent=1 // pred_region
      _
    $region5: #{tpu_custom_call.1} parent=1 // pred_fallthru
      _
    // Predicated region
    $region6: #{tpu_custom_call.1} parent=1 // pred_check
      _
    $region7: #{tpu_custom_call.1} parent=1 // pred_check_branch
      %17 = sbr.rel (0) target = $region9
    $region8: #{tpu_custom_call.1} parent=1 // pred_region
      %19 = vsyncadd [#allocation3], 0
      %s20 = sshll.u32 %s1, 4
      %s21 = int_to_ptr.hbm [resolvable:$true] %s20
      %s22 = sshll.u32 [#allocation2], 4
      %s23 = int_to_ptr.vmem [resolvable:$true] %s22
      %28 = dma.hbm_to_vmem [thread:$0]  %s21, 256, %s23, [#allocation3], 128, 128, 8
    $region9: #{tpu_custom_call.1} parent=1 // pred_fallthru
      _
    // Predicated region
    $region10: #{tpu_custom_call.1} parent=1 // pred_check
      _
    $region11: #{tpu_custom_call.1} parent=1 // pred_check_branch
      %30 = sbr.rel (0) target = $region13
    $region12: #{tpu_custom_call.1} parent=1 // pred_region
      %32 = vsyncadd [#allocation6], 0
      %s33 = sshll.u32 %s2, 4
      %s34 = int_to_ptr.hbm [resolvable:$true] %s33
      %s35 = sshll.u32 [#allocation5], 4
      %s36 = int_to_ptr.vmem [resolvable:$true] %s35
      %41 = dma.hbm_to_vmem [thread:$0]  %s34, 256, %s36, [#allocation6], 128, 128, 8
    $region13: #{tpu_custom_call.1} parent=1 // pred_fallthru
      _
    // Predicated region
    $region14: #{tpu_custom_call.1} parent=1 // pred_check
      _
    $region15: #{tpu_custom_call.1} parent=1 // pred_check_branch
      %43 = sbr.rel (0) target = $region17
    $region16: #{tpu_custom_call.1} parent=1 // pred_region
      %45 = vsyncadd [#allocation6], 0
      %s46 = sshll.u32 %s3, 4
      %s47 = int_to_ptr.hbm [resolvable:$true] %s46
      %s48 = sshll.u32 [#allocation7], 4
      %s49 = int_to_ptr.vmem [resolvable:$true] %s48
      %54 = dma.hbm_to_vmem [thread:$0]  %s47, 256, %s49, [#allocation6], 128, 128, 8
    $region17: #{tpu_custom_call.1} parent=1 // pred_fallthru
      _
    // Predicated region
    $region18: #{tpu_custom_call.1} parent=1 // pred_check
      _
    $region19: #{tpu_custom_call.1} parent=1 // pred_check_branch
      %56 = sbr.rel (0) target = $region21
    $region20: #{tpu_custom_call.1} parent=1 // pred_region
      _
    $region21: #{tpu_custom_call.1} parent=1 // pred_fallthru
      _
    // Predicated region
    $region22: #{tpu_custom_call.1} parent=1 // pred_check
      _
    $region23: #{tpu_custom_call.1} parent=1 // pred_check_branch
      %58 = sbr.rel (0) target = $region25
    $region24: #{tpu_custom_call.1} parent=1 // pred_region
      _
    $region25: #{tpu_custom_call.1} parent=1 // pred_fallthru
      _
    // Predicated region
    $region26: #{tpu_custom_call.1} parent=1 // pred_check
      _
    $region27: #{tpu_custom_call.1} parent=1 // pred_check_branch
      %60 = sbr.rel (0) target = $region29
    $region28: #{tpu_custom_call.1} parent=1 // pred_region
      %62 = dma.done [#allocation3], 256
    $region29: #{tpu_custom_call.1} parent=1 // pred_fallthru
      _
    // Predicated region
    $region30: #{tpu_custom_call.1} parent=1 // pred_check
      _
    $region31: #{tpu_custom_call.1} parent=1 // pred_check_branch
      %64 = sbr.rel (0) target = $region33
    $region32: #{tpu_custom_call.1} parent=1 // pred_region
      %66 = dma.done [#allocation6], 256
    $region33: #{tpu_custom_call.1} parent=1 // pred_fallthru
      _
    // Predicated region
    $region34: #{tpu_custom_call.1} parent=1 // pred_check
      _
    $region35: #{tpu_custom_call.1} parent=1 // pred_check_branch
      %68 = sbr.rel (0) target = $region37
    $region36: #{tpu_custom_call.1} parent=1 // pred_region
      %70 = dma.done [#allocation6], 256
    $region37: #{tpu_custom_call.1} parent=1 // pred_fallthru
      _
    %v71 = vld [vmem:[%s0] sm:$0xff]
    %v72 = vld [vmem:[%s0 + $0x8] sm:$0xff]
    %v73 = vld [vmem:[#allocation2] sm:$0xff]
    %v74 = vld [vmem:[#allocation2 + $0x8] sm:$0xff]
    %v75 = vld [vmem:[#allocation5] sm:$0xff]
    %v76 = vld [vmem:[#allocation5 + $0x8] sm:$0xff]
    %v77 = vld [vmem:[#allocation7] sm:$0xff]
    %v78 = vld [vmem:[#allocation7 + $0x8] sm:$0xff]
    %81 = vst [vmem:[#allocation1] ss:$2 sm:$0xff] %v71
    %v82 = vld.sshfl [vmem:[#allocation1] sm:$0xff pattern:$0x75316420]
    %v83 = vld.sshfl [vmem:[#allocation1 + $0x8] sm:$0xff pattern:$0x75316420]
    %s84 = scalar_lea.vmem [#allocation1], 16
    %85 = vst [vmem:[%s84] ss:$2 sm:$0xff] %v72
    %v86 = vld.sshfl [vmem:[#allocation1 + $0x10] sm:$0xff pattern:$0x75316420]
    %v87 = vld.sshfl [vmem:[#allocation1 + $0x18] sm:$0xff pattern:$0x75316420]
    %vm92 = vcmask 1043456
    %v93 = vsel %vm92, %v82, 0.0
    %v94 = vsel %vm92, %v83, 0.0
    %v95 = vadd.f32 %v93, %v94
    %96 = vadd.xlane.f32.xlu0 %v95
    %v97 = vpop.xlane.xlu0 %96
    %v98 = vsel %vm92, %v86, 0.0
    %v99 = vsel %vm92, %v87, 0.0
    %v100 = vadd.f32 %v98, %v99
    %101 = vadd.xlane.f32.xlu0 %v100
    %v102 = vpop.xlane.xlu0 %101
    %v103 = vrcp.pop 256.0
    %v104 = vmul.f32 256.0, %v103
    %v105 = vsub.f32 1.0, %v104
    %v106 = vmul.f32 %v103, %v105
    %v107 = vadd.f32 %v103, %v106
    %vm108 = vweird.f32 %v103
    %v109 = vsel %vm108, %v103, %v107
    %v110 = vmul.f32 %v97, %v109
    %v111 = vmul.f32 %v102, %v109
    %114 = vst [vmem:[#allocation1] ss:$2 sm:$0xff] %v73
    %v115 = vld.sshfl [vmem:[#allocation1] sm:$0xff pattern:$0x75316420]
    %v116 = vld.sshfl [vmem:[#allocation1 + $0x8] sm:$0xff pattern:$0x75316420]
    %s117 = scalar_lea.vmem [#allocation1], 16
    %118 = vst [vmem:[%s117] ss:$2 sm:$0xff] %v74
    %v119 = vld.sshfl [vmem:[#allocation1 + $0x10] sm:$0xff pattern:$0x75316420]
    %v120 = vld.sshfl [vmem:[#allocation1 + $0x18] sm:$0xff pattern:$0x75316420]
    %v125 = vsel %vm92, %v115, 0.0
    %v126 = vsel %vm92, %v116, 0.0
    %v127 = vadd.f32 %v125, %v126
    %128 = vadd.xlane.f32.xlu0 %v127
    %v129 = vpop.xlane.xlu0 %128
    %v130 = vsel %vm92, %v119, 0.0
    %v131 = vsel %vm92, %v120, 0.0
    %v132 = vadd.f32 %v130, %v131
    %133 = vadd.xlane.f32.xlu0 %v132
    %v134 = vpop.xlane.xlu0 %133
    %v135 = vmul.f32 %v129, %v109
    %v136 = vmul.f32 %v134, %v109
    %139 = vst [vmem:[#allocation1] ss:$2 sm:$0xff] %v75
    %v140 = vld.sshfl [vmem:[#allocation1] sm:$0xff pattern:$0x75316420]
    %v141 = vld.sshfl [vmem:[#allocation1 + $0x8] sm:$0xff pattern:$0x75316420]
    %s142 = scalar_lea.vmem [#allocation1], 16
    %143 = vst [vmem:[%s142] ss:$2 sm:$0xff] %v76
    %v144 = vld.sshfl [vmem:[#allocation1 + $0x10] sm:$0xff pattern:$0x75316420]
    %v145 = vld.sshfl [vmem:[#allocation1 + $0x18] sm:$0xff pattern:$0x75316420]
    %v150 = vsel %vm92, %v140, 0.0
    %v151 = vsel %vm92, %v141, 0.0
    %v152 = vadd.f32 %v150, %v151
    %153 = vadd.xlane.f32.xlu0 %v152
    %v154 = vpop.xlane.xlu0 %153
    %v155 = vsel %vm92, %v144, 0.0
    %v156 = vsel %vm92, %v145, 0.0
    %v157 = vadd.f32 %v155, %v156
    %158 = vadd.xlane.f32.xlu0 %v157
    %v159 = vpop.xlane.xlu0 %158
    %v160 = vmul.f32 %v154, %v109
    %v161 = vmul.f32 %v159, %v109
    %164 = vst [vmem:[#allocation1] ss:$2 sm:$0xff] %v77
    %v165 = vld.sshfl [vmem:[#allocation1] sm:$0xff pattern:$0x75316420]
    %v166 = vld.sshfl [vmem:[#allocation1 + $0x8] sm:$0xff pattern:$0x75316420]
    %s167 = scalar_lea.vmem [#allocation1], 16
    %168 = vst [vmem:[%s167] ss:$2 sm:$0xff] %v78
    %v169 = vld.sshfl [vmem:[#allocation1 + $0x10] sm:$0xff pattern:$0x75316420]
    %v170 = vld.sshfl [vmem:[#allocation1 + $0x18] sm:$0xff pattern:$0x75316420]
    %v175 = vsel %vm92, %v165, 0.0
    %v176 = vsel %vm92, %v166, 0.0
    %v177 = vadd.f32 %v175, %v176
    %178 = vadd.xlane.f32.xlu0 %v177
    %v179 = vpop.xlane.xlu0 %178
    %v180 = vsel %vm92, %v169, 0.0
    %v181 = vsel %vm92, %v170, 0.0
    %v182 = vadd.f32 %v180, %v181
    %183 = vadd.xlane.f32.xlu0 %v182
    %v184 = vpop.xlane.xlu0 %183
    %v185 = vmul.f32 %v179, %v109
    %v186 = vmul.f32 %v184, %v109
    %v189 = vlaneseq
    %v190 = vand.u32 %v189, 127
    %v191 = vperm.slane %v110, %v190
    %v192 = vperm.slane %v111, %v190
    %vm193 = vcmask 1041409
    %v194 = vsel %vm193, %v192, %v191
    %v198 = vadd.s32 %v190, 4294967292
    %v199 = vperm.slane %v135, %v198
    %v200 = vperm.slane %v136, %v198
    %v201 = vsel %vm193, %v200, %v199
    %v205 = vadd.s32 %v190, 4294967288
    %v206 = vperm.slane %v160, %v205
    %v207 = vperm.slane %v161, %v205
    %v208 = vsel %vm193, %v207, %v206
    %v212 = vadd.s32 %v190, 4294967284
    %v213 = vperm.slane %v185, %v212
    %v214 = vperm.slane %v186, %v212
    %v215 = vsel %vm193, %v214, %v213
    %vm217 = vcmask 31744
    %v218 = vsel %vm217, %v194, %v201
    %vm219 = vcmask 64512
    %v220 = vsel %vm219, %v218, %v208
    %vm221 = vcmask 97280
    %v222 = vsel %vm221, %v220, %v215
    %v223 = vld [vmem:[%s4] sm:$0xff]
    %v224 = vld [vmem:[%s4 + $0x8] sm:$0xff]
    %vm225 = vcmask 130048
    %v227 = vsel %vm225, %v222, 0
    %229 = vmatpush.msra.mxu0 0.0
    %230 = vmatpush.msra.mxu0 0.0
    %231 = vmatpush.msra.mxu0 0.0
    %232 = vmatpush.msra.mxu0 0.0
    %233 = vmatpush.msra.mxu0 0.0
    %234 = vmatpush.msra.mxu0 0.0
    %235 = vmatpush.msra.mxu0 0.0
    %236 = vmatpush.msra.mxu0 0.0
    %237 = vmatpush.msra.mxu0 0.0
    %238 = vmatpush.msra.mxu0 0.0
    %239 = vmatpush.msra.mxu0 0.0
    %240 = vmatpush.msra.mxu0 0.0
    %241 = vmatpush.msra.mxu0 0.0
    %242 = vmatpush.msra.mxu0 0.0
    %243 = vmatpush.msra.mxu0 %v224
    %244 = vmatpush.msra.mxu0 %v223
    %245 = vmatmul.f32.gmra.mxu0 %v227
    %v246 = vpop.f32.mrf.mxu0
    %v247 = vadd.f32 0.0, %v246
    %248 = vdwg.mxu0
    %v249 = vxor.u32 %v247, 2147483648
    %v250 = vmul.f32 %v249, 1.442695
    %v251 = vpow.pop %v250
    %v252 = vadd.f32 %v251, 1.0
    %v253 = vrcp.pop %v252
    %v254 = vmul.f32 %v252, %v253
    %v255 = vsub.f32 1.0, %v254
    %v256 = vmul.f32 %v253, %v255
    %v257 = vadd.f32 %v253, %v256
    %vm258 = vweird.f32 %v252
    %vm259 = vweird.f32 %v253
    %vm260 = vmor %vm258, %vm259
    %v261 = vsel %vm260, %v253, %v257
    %v262 = vand.u32 2147483647, %v252
    %vm263 = vcmp.eq.f32.partialorder %v262, 8.507059e+37
    %v264 = vand.u32 %v252, 2147483648
    %v265 = vor.u32 1.1754944e-38, %v264
    %v266 = vsel %vm263, %v265, %v261
    %v267 = vmul.f32 1.0, %v266
    %v268 = vmul.f32 %v247, %v267
    %v269 = vld [vmem:[%s5] sm:$0xf]
    %v271 = vsel %vm217, %v268, 0
    %v274 = vsel %vm92, %v269, 0
    %276 = vmatpush.msra.mxu0 0.0
    %277 = vmatpush.msra.mxu0 0.0
    %278 = vmatpush.msra.mxu0 0.0
    %279 = vmatpush.msra.mxu0 0.0
    %280 = vmatpush.msra.mxu0 0.0
    %281 = vmatpush.msra.mxu0 0.0
    %282 = vmatpush.msra.mxu0 0.0
    %283 = vmatpush.msra.mxu0 0.0
    %284 = vmatpush.msra.mxu0 0.0
    %285 = vmatpush.msra.mxu0 0.0
    %286 = vmatpush.msra.mxu0 0.0
    %287 = vmatpush.msra.mxu0 0.0
    %288 = vmatpush.msra.mxu0 0.0
    %289 = vmatpush.msra.mxu0 0.0
    %290 = vmatpush.msra.mxu0 0.0
    %291 = vmatpush.msra.mxu0 %v274
    %292 = vmatmul.f32.gmra.mxu0 %v271
    %v293 = vpop.f32.mrf.mxu0
    %v294 = vadd.f32 0.0, %v293
    %295 = vdwg.mxu0
    %v296 = vxor.u32 %v294, 2147483648
    %v297 = vmul.f32 %v296, 1.442695
    %v298 = vpow.pop %v297
    %v299 = vadd.f32 %v298, 1.0
    %v300 = vrcp.pop %v299
    %v301 = vmul.f32 %v299, %v300
    %v302 = vsub.f32 1.0, %v301
    %v303 = vmul.f32 %v300, %v302
    %v304 = vadd.f32 %v300, %v303
    %vm305 = vweird.f32 %v299
    %vm306 = vweird.f32 %v300
    %vm307 = vmor %vm305, %vm306
    %v308 = vsel %vm307, %v300, %v304
    %v309 = vand.u32 2147483647, %v299
    %vm310 = vcmp.eq.f32.partialorder %v309, 8.507059e+37
    %v311 = vand.u32 %v299, 2147483648
    %v312 = vor.u32 1.1754944e-38, %v311
    %v313 = vsel %vm310, %v312, %v308
    %v314 = vmul.f32 1.0, %v313
    %v315 = vmul.f32 %v294, %v314
    %v317 = vrot.slane %v315, 1
    %v318 = vperm.slane %v315, 0
    %v319 = vperm.slane %v317, 0
    %320 = vset.pattern.permute.xlu0 0
    %321 = vperm.xlu0 %320, %v318
    %v322 = vpop.permute.xlu0 %321
    %324 = vset.pattern.permute.xlu0 0
    %325 = vperm.xlu0 %324, %v319
    %v326 = vpop.permute.xlu0 %325
    %v328 = vmul.f32 %v322, %v71
    %v329 = vmul.f32 %v326, %v72
    %330 = vset.pattern.permute.xlu0 1
    %331 = vperm.xlu0 %330, %v318
    %v332 = vpop.permute.xlu0 %331
    %334 = vset.pattern.permute.xlu0 1
    %335 = vperm.xlu0 %334, %v319
    %v336 = vpop.permute.xlu0 %335
    %v338 = vmul.f32 %v332, %v73
    %v339 = vmul.f32 %v336, %v74
    %v340 = vadd.f32 %v328, %v338
    %v341 = vadd.f32 %v329, %v339
    %342 = vset.pattern.permute.xlu0 2
    %343 = vperm.xlu0 %342, %v318
    %v344 = vpop.permute.xlu0 %343
    %346 = vset.pattern.permute.xlu0 2
    %347 = vperm.xlu0 %346, %v319
    %v348 = vpop.permute.xlu0 %347
    %v350 = vmul.f32 %v344, %v75
    %v351 = vmul.f32 %v348, %v76
    %v352 = vadd.f32 %v340, %v350
    %v353 = vadd.f32 %v341, %v351
    %354 = vset.pattern.permute.xlu0 3
    %355 = vperm.xlu0 %354, %v318
    %v356 = vpop.permute.xlu0 %355
    %358 = vset.pattern.permute.xlu0 3
    %359 = vperm.xlu0 %358, %v319
    %v360 = vpop.permute.xlu0 %359
    %v362 = vmul.f32 %v356, %v77
    %v363 = vmul.f32 %v360, %v78
    %v364 = vadd.f32 %v352, %v362
    %v365 = vadd.f32 %v353, %v363
    %366 = vst [vmem:[#allocation8] sm:$0xff] %v364
    %367 = vst [vmem:[#allocation8 + $0x8] sm:$0xff] %v365
    // Predicated region
    $region38: #{tpu_custom_call.1} parent=1 // pred_check
      _
    $region39: #{tpu_custom_call.1} parent=1 // pred_check_branch
      %369 = sbr.rel (0) target = $region41
    $region40: #{tpu_custom_call.1} parent=1 // pred_region
      %371 = vsyncadd [#allocation4], 0
      %s372 = sshll.u32 [#allocation8], 4
      %s373 = int_to_ptr.vmem [resolvable:$true] %s372
      %s374 = sshll.u32 %s6, 4
      %s375 = int_to_ptr.hbm [resolvable:$true] %s374
      %380 = dma.vmem_to_hbm [thread:$0]  %s373, 256, %s375, [#allocation4], 128, 128, 8
    $region41: #{tpu_custom_call.1} parent=1 // pred_fallthru
      _
    // Predicated region
    $region42: #{tpu_custom_call.1} parent=1 // pred_check
      _
    $region43: #{tpu_custom_call.1} parent=1 // pred_check_branch
      %382 = sbr.rel (0) target = $region45
    $region44: #{tpu_custom_call.1} parent=1 // pred_region
      %384 = dma.done [#allocation4], 256
    $region45: #{tpu_custom_call.1} parent=1 // pred_fallthru
      _
    %385 = vsyncpa [#allocation3], 1
    %386 = vsyncpa [#allocation6], 1
    %387 = vsyncpa [#allocation4], 1

</llo_original>
